<compile_context>
chip_gen: v6e
topology: v6e:2x2x1
jax: 0.10.0
libtpu: 0.0.40
codegen_flags: <defaults>
</compile_context>

<pallas_src>
import jax
import jax.numpy as jnp
from jax.experimental import pallas as pl
from jax.experimental.pallas import tpu as pltpu

C_IN_IMG = 3       # RGB image channels
C_OUT = 3          # output channels
C_LAMA_IN = 4      # concat(masked_image(3), mask(1))

LANES = 128
TILE_ROWS_MAX = 512   # 512 rows x 128 lanes = 65536 px per grid step


def _round_up(x, m):
    return ((x + m - 1) // m) * m


def coreml_lama_kernel(w_ref, b_ref, img_ref, mask_ref, out_ref):
    """One (image, row-tile) per grid step.

    w_ref    : SMEM (C_OUT, C_LAMA_IN)  f32  -- 1x1 conv weights of stand-in lama
    b_ref    : SMEM (C_OUT,)            f32  -- bias
    img_ref  : VMEM (1, 3, TR, 128)     f32
    mask_ref : VMEM (1, 1, TR, 128)     f32
    out_ref  : VMEM (1, 3, TR, 128)     f32
    """
    # normalized_mask = ((mask > 0) * 1)  -> binary {0, 1}
    m = (mask_ref[0, 0] > 0).astype(jnp.float32)          # (TR, 128)
    inv_m = 1.0 - m

    # Hoisted out of the output-channel loop: mask the image once (3 vmuls).
    masked = img_ref[0] * inv_m                           # (3, TR, 128)

    # stand-in lama: 1x1 conv over [image * (1 - m), m], then sigmoid.
    for co in range(C_OUT):
        acc = w_ref[co, C_IN_IMG] * m + b_ref[co]         # (TR, 128)
        for ci in range(C_IN_IMG):
            acc = acc + w_ref[co, ci] * masked[ci]
        lama_out = jax.nn.sigmoid(acc)
        # output = clamp(lama_out * 255, 0, 255)
        # (mathematically redundant after sigmoid, kept to mirror the wrapper;
        #  VPU has large slack in this HBM-bound kernel)
        out_ref[0, co] = jnp.clip(lama_out * 255.0, 0.0, 255.0)


def coreml_lama(image, mask, w, b):
    """image: (N,3,H,W) f32, mask: (N,1,H,W) f32, w: (3,4) f32, b: (3,) f32."""
    N, C, H, W = image.shape
    assert C == C_IN_IMG
    P = H * W

    # Pad the pixel axis only to the next multiple of 128 lanes (<= 127 px,
    # negligible), then view it as (rows, 128) so all blocks are lane- and
    # sublane-dense.
    P_pad = _round_up(P, LANES)
    img_flat = image.reshape(N, C_IN_IMG, P)
    msk_flat = mask.reshape(N, 1, P)
    if P_pad != P:
        pad = ((0, 0), (0, 0), (0, P_pad - P))
        img_flat = jnp.pad(img_flat, pad)
        msk_flat = jnp.pad(msk_flat, pad)
    R = P_pad // LANES
    img4 = img_flat.reshape(N, C_IN_IMG, R, LANES)
    msk4 = msk_flat.reshape(N, 1, R, LANES)

    # Row-tile selection:
    #  * default: whole row axis if it fits one tile, else TILE_ROWS_MAX.
    #  * N == 1: force >= 2 row tiles so v7x's second TensorCore is used.
    if N == 1 and R >= 16:
        tile_rows = min(TILE_ROWS_MAX, _round_up(pl.cdiv(R, 2), 8))
    elif R <= TILE_ROWS_MAX:
        tile_rows = R
    else:
        tile_rows = TILE_ROWS_MAX

    grid = (N, pl.cdiv(R, tile_rows))   # ragged last row-tile handled by Pallas

    out4 = pl.pallas_call(
        coreml_lama_kernel,
        out_shape=jax.ShapeDtypeStruct((N, C_OUT, R, LANES), jnp.float32),
        grid=grid,
        in_specs=[
            pl.BlockSpec(memory_space=pltpu.MemorySpace.SMEM),               # w
            pl.BlockSpec(memory_space=pltpu.MemorySpace.SMEM),               # b
            pl.BlockSpec((1, C_IN_IMG, tile_rows, LANES),
                         lambda n, t: (n, 0, t, 0)),                         # image
            pl.BlockSpec((1, 1, tile_rows, LANES),
                         lambda n, t: (n, 0, t, 0)),                         # mask
        ],
        out_specs=pl.BlockSpec((1, C_OUT, tile_rows, LANES),
                               lambda n, t: (n, 0, t, 0)),
        compiler_params=pltpu.CompilerParams(
            dimension_semantics=("parallel", "parallel"),
        ),
    )(w, b, img4, msk4)

    return out4.reshape(N, C_OUT, P_pad)[:, :, :P].reshape(N, C_OUT, H, W)


def coreml_lama_ref(image, mask, w, b):
    """Pure-JAX reference mirroring the PyTorch wrapper semantics."""
    m = (mask > 0).astype(jnp.float32)                        # (N,1,H,W)
    masked = image * (1.0 - m)                                # (N,3,H,W)
    x = jnp.concatenate([masked, m], axis=1)                  # (N,4,H,W)
    y = jnp.einsum("oc,nchw->nohw", w, x) + b[None, :, None, None]
    lama_out = jax.nn.sigmoid(y)
    return jnp.clip(lama_out * 255.0, 0.0, 255.0)


if __name__ == "__main__":
    key = jax.random.PRNGKey(0)
    k_img, k_mask, k_w, k_b = jax.random.split(key, 4)

    N, H, W = 2, 16, 16
    image = jax.random.uniform(k_img, (N, C_IN_IMG, H, W), jnp.float32)
    # mask has positive and non-positive values so binarization is exercised
    mask = jax.random.normal(k_mask, (N, 1, H, W), jnp.float32)

    # deterministic synthetic parameters for the stand-in lama head
    w = 0.5 * jax.random.normal(k_w, (C_OUT, C_LAMA_IN), jnp.float32)
    b = 0.1 * jax.random.normal(k_b, (C_OUT,), jnp.float32)

    out = coreml_lama(image, mask, w, b)
    out = jax.block_until_ready(out)

    ref = coreml_lama_ref(image, mask, w, b)
    assert out.shape == (N, C_OUT, H, W)
    assert jnp.allclose(out, ref, atol=1e-3, rtol=1e-4)

    print("KERNEL_OK")
</pallas_src>

<mosaic_0001>
module attributes {stable_mosaic.version = 11 : i64} {
  func.func @coreml_lama_kernel(%arg0: i32, %arg1: i32, %arg2: memref<3x4xf32, #tpu.memory_space<smem>>, %arg3: memref<3xf32, #tpu.memory_space<smem>>, %arg4: memref<1x3x2x128xf32, #tpu.memory_space<vmem>>, %arg5: memref<1x1x2x128xf32, #tpu.memory_space<vmem>>, %arg6: memref<1x3x2x128xf32, #tpu.memory_space<vmem>>) attributes {dimension_semantics = [#tpu.dimension_semantics<parallel>, #tpu.dimension_semantics<parallel>], iteration_bounds = array<i64: 2, 1>, scalar_prefetch = 0 : i64, scratch_operands = 0 : i64, tpu.core_type = #tpu.core_type<tc>, window_params = [{transform_indices = @transform_0, window_bounds = array<i64: 3, 4>}, {transform_indices = @transform_1, window_bounds = array<i64: 3>}, {transform_indices = @transform_2, window_bounds = array<i64: 1, 3, 2, 128>}, {transform_indices = @transform_3, window_bounds = array<i64: 1, 1, 2, 128>}, {transform_indices = @transform_4, window_bounds = array<i64: 1, 3, 2, 128>}]} {
    %c0 = arith.constant 0 : index
    %c0_0 = arith.constant 0 : index
    %c0_1 = arith.constant 0 : index
    %c0_2 = arith.constant 0 : index
    %0 = vector.load %arg5[%c0, %c0_0, %c0_1, %c0_2] : memref<1x1x2x128xf32, #tpu.memory_space<vmem>>, vector<1x1x2x128xf32>
    %1 = vector.shape_cast %0 : vector<1x1x2x128xf32> to vector<2x128xf32>
    %cst = arith.constant 0.000000e+00 : f32
    %2 = vector.broadcast %cst : f32 to vector<2x128xf32>
    %3 = arith.cmpf ogt, %1, %2 : vector<2x128xf32>
    %4 = arith.extui %3 : vector<2x128xi1> to vector<2x128xi32>
    %5 = arith.sitofp %4 : vector<2x128xi32> to vector<2x128xf32>
    %cst_3 = arith.constant 1.000000e+00 : f32
    %6 = vector.broadcast %cst_3 : f32 to vector<2x128xf32>
    %7 = arith.subf %6, %5 : vector<2x128xf32>
    %c0_4 = arith.constant 0 : index
    %c0_5 = arith.constant 0 : index
    %c0_6 = arith.constant 0 : index
    %c0_7 = arith.constant 0 : index
    %8 = vector.load %arg4[%c0_4, %c0_5, %c0_6, %c0_7] : memref<1x3x2x128xf32, #tpu.memory_space<vmem>>, vector<1x3x2x128xf32>
    %9 = vector.shape_cast %8 : vector<1x3x2x128xf32> to vector<3x2x128xf32>
    %10 = vector.shape_cast %7 : vector<2x128xf32> to vector<1x2x128xf32>
    %11 = vector.broadcast %10 : vector<1x2x128xf32> to vector<3x2x128xf32>
    %12 = arith.mulf %9, %11 : vector<3x2x128xf32>
    %c0_8 = arith.constant 0 : index
    %c3 = arith.constant 3 : index
    %13 = memref.load %arg2[%c0_8, %c3] : memref<3x4xf32, #tpu.memory_space<smem>>
    %14 = vector.broadcast %13 : f32 to vector<2x128xf32>
    %15 = arith.mulf %14, %5 : vector<2x128xf32>
    %c0_9 = arith.constant 0 : index
    %16 = memref.load %arg3[%c0_9] : memref<3xf32, #tpu.memory_space<smem>>
    %17 = vector.broadcast %16 : f32 to vector<2x128xf32>
    %18 = arith.addf %15, %17 : vector<2x128xf32>
    %c0_10 = arith.constant 0 : index
    %c0_11 = arith.constant 0 : index
    %19 = memref.load %arg2[%c0_10, %c0_11] : memref<3x4xf32, #tpu.memory_space<smem>>
    %20 = vector.extract_strided_slice %12 {offsets = [0, 0, 0], sizes = [1, 2, 128], strides = [1, 1, 1]} : vector<3x2x128xf32> to vector<1x2x128xf32>
    %21 = vector.shape_cast %20 : vector<1x2x128xf32> to vector<2x128xf32>
    %22 = vector.broadcast %19 : f32 to vector<2x128xf32>
    %23 = arith.mulf %22, %21 : vector<2x128xf32>
    %24 = arith.addf %18, %23 : vector<2x128xf32>
    %c0_12 = arith.constant 0 : index
    %c1 = arith.constant 1 : index
    %25 = memref.load %arg2[%c0_12, %c1] : memref<3x4xf32, #tpu.memory_space<smem>>
    %26 = vector.extract_strided_slice %12 {offsets = [1, 0, 0], sizes = [1, 2, 128], strides = [1, 1, 1]} : vector<3x2x128xf32> to vector<1x2x128xf32>
    %27 = vector.shape_cast %26 : vector<1x2x128xf32> to vector<2x128xf32>
    %28 = vector.broadcast %25 : f32 to vector<2x128xf32>
    %29 = arith.mulf %28, %27 : vector<2x128xf32>
    %30 = arith.addf %24, %29 : vector<2x128xf32>
    %c0_13 = arith.constant 0 : index
    %c2 = arith.constant 2 : index
    %31 = memref.load %arg2[%c0_13, %c2] : memref<3x4xf32, #tpu.memory_space<smem>>
    %32 = vector.extract_strided_slice %12 {offsets = [2, 0, 0], sizes = [1, 2, 128], strides = [1, 1, 1]} : vector<3x2x128xf32> to vector<1x2x128xf32>
    %33 = vector.shape_cast %32 : vector<1x2x128xf32> to vector<2x128xf32>
    %34 = vector.broadcast %31 : f32 to vector<2x128xf32>
    %35 = arith.mulf %34, %33 : vector<2x128xf32>
    %36 = arith.addf %30, %35 : vector<2x128xf32>
    %37 = arith.negf %36 : vector<2x128xf32>
    %38 = math.exp %37 : vector<2x128xf32>
    %cst_14 = arith.constant 1.000000e+00 : f32
    %39 = vector.broadcast %cst_14 : f32 to vector<2x128xf32>
    %40 = arith.addf %39, %38 : vector<2x128xf32>
    %41 = arith.divf %39, %40 : vector<2x128xf32>
    %cst_15 = arith.constant 2.550000e+02 : f32
    %42 = vector.broadcast %cst_15 : f32 to vector<2x128xf32>
    %43 = arith.mulf %41, %42 : vector<2x128xf32>
    %cst_16 = arith.constant 0.000000e+00 : f32
    %cst_17 = arith.constant 2.550000e+02 : f32
    %44 = vector.broadcast %cst_16 : f32 to vector<2x128xf32>
    %45 = arith.maximumf %44, %43 : vector<2x128xf32>
    %46 = vector.broadcast %cst_17 : f32 to vector<2x128xf32>
    %47 = arith.minimumf %46, %45 : vector<2x128xf32>
    %c0_18 = arith.constant 0 : index
    %c0_19 = arith.constant 0 : index
    %c0_20 = arith.constant 0 : index
    %c0_21 = arith.constant 0 : index
    %48 = vector.load %arg6[%c0_18, %c0_19, %c0_20, %c0_21] : memref<1x3x2x128xf32, #tpu.memory_space<vmem>>, vector<1x1x2x128xf32>
    %49 = vector.shape_cast %48 : vector<1x1x2x128xf32> to vector<2x128xf32>
    %50 = vector.shape_cast %47 : vector<2x128xf32> to vector<1x1x2x128xf32>
    tpu.vector_store %arg6[%c0_18, %c0_19, %c0_20, %c0_21], %50 {strides = array<i32>} : memref<1x3x2x128xf32, #tpu.memory_space<vmem>>, vector<1x1x2x128xf32>,
    %c1_22 = arith.constant 1 : index
    %c3_23 = arith.constant 3 : index
    %51 = memref.load %arg2[%c1_22, %c3_23] : memref<3x4xf32, #tpu.memory_space<smem>>
    %52 = vector.broadcast %51 : f32 to vector<2x128xf32>
    %53 = arith.mulf %52, %5 : vector<2x128xf32>
    %c1_24 = arith.constant 1 : index
    %54 = memref.load %arg3[%c1_24] : memref<3xf32, #tpu.memory_space<smem>>
    %55 = vector.broadcast %54 : f32 to vector<2x128xf32>
    %56 = arith.addf %53, %55 : vector<2x128xf32>
    %c1_25 = arith.constant 1 : index
    %c0_26 = arith.constant 0 : index
    %57 = memref.load %arg2[%c1_25, %c0_26] : memref<3x4xf32, #tpu.memory_space<smem>>
    %58 = vector.extract_strided_slice %12 {offsets = [0, 0, 0], sizes = [1, 2, 128], strides = [1, 1, 1]} : vector<3x2x128xf32> to vector<1x2x128xf32>
    %59 = vector.shape_cast %58 : vector<1x2x128xf32> to vector<2x128xf32>
    %60 = vector.broadcast %57 : f32 to vector<2x128xf32>
    %61 = arith.mulf %60, %59 : vector<2x128xf32>
    %62 = arith.addf %56, %61 : vector<2x128xf32>
    %c1_27 = arith.constant 1 : index
    %c1_28 = arith.constant 1 : index
    %63 = memref.load %arg2[%c1_27, %c1_28] : memref<3x4xf32, #tpu.memory_space<smem>>
    %64 = vector.extract_strided_slice %12 {offsets = [1, 0, 0], sizes = [1, 2, 128], strides = [1, 1, 1]} : vector<3x2x128xf32> to vector<1x2x128xf32>
    %65 = vector.shape_cast %64 : vector<1x2x128xf32> to vector<2x128xf32>
    %66 = vector.broadcast %63 : f32 to vector<2x128xf32>
    %67 = arith.mulf %66, %65 : vector<2x128xf32>
    %68 = arith.addf %62, %67 : vector<2x128xf32>
    %c1_29 = arith.constant 1 : index
    %c2_30 = arith.constant 2 : index
    %69 = memref.load %arg2[%c1_29, %c2_30] : memref<3x4xf32, #tpu.memory_space<smem>>
    %70 = vector.extract_strided_slice %12 {offsets = [2, 0, 0], sizes = [1, 2, 128], strides = [1, 1, 1]} : vector<3x2x128xf32> to vector<1x2x128xf32>
    %71 = vector.shape_cast %70 : vector<1x2x128xf32> to vector<2x128xf32>
    %72 = vector.broadcast %69 : f32 to vector<2x128xf32>
    %73 = arith.mulf %72, %71 : vector<2x128xf32>
    %74 = arith.addf %68, %73 : vector<2x128xf32>
    %75 = arith.negf %74 : vector<2x128xf32>
    %76 = math.exp %75 : vector<2x128xf32>
    %cst_31 = arith.constant 1.000000e+00 : f32
    %77 = vector.broadcast %cst_31 : f32 to vector<2x128xf32>
    %78 = arith.addf %77, %76 : vector<2x128xf32>
    %79 = arith.divf %77, %78 : vector<2x128xf32>
    %cst_32 = arith.constant 2.550000e+02 : f32
    %80 = vector.broadcast %cst_32 : f32 to vector<2x128xf32>
    %81 = arith.mulf %79, %80 : vector<2x128xf32>
    %cst_33 = arith.constant 0.000000e+00 : f32
    %cst_34 = arith.constant 2.550000e+02 : f32
    %82 = vector.broadcast %cst_33 : f32 to vector<2x128xf32>
    %83 = arith.maximumf %82, %81 : vector<2x128xf32>
    %84 = vector.broadcast %cst_34 : f32 to vector<2x128xf32>
    %85 = arith.minimumf %84, %83 : vector<2x128xf32>
    %c0_35 = arith.constant 0 : index
    %c1_36 = arith.constant 1 : index
    %c0_37 = arith.constant 0 : index
    %c0_38 = arith.constant 0 : index
    %86 = vector.load %arg6[%c0_35, %c1_36, %c0_37, %c0_38] : memref<1x3x2x128xf32, #tpu.memory_space<vmem>>, vector<1x1x2x128xf32>
    %87 = vector.shape_cast %86 : vector<1x1x2x128xf32> to vector<2x128xf32>
    %88 = vector.shape_cast %85 : vector<2x128xf32> to vector<1x1x2x128xf32>
    tpu.vector_store %arg6[%c0_35, %c1_36, %c0_37, %c0_38], %88 {strides = array<i32>} : memref<1x3x2x128xf32, #tpu.memory_space<vmem>>, vector<1x1x2x128xf32>,
    %c2_39 = arith.constant 2 : index
    %c3_40 = arith.constant 3 : index
    %89 = memref.load %arg2[%c2_39, %c3_40] : memref<3x4xf32, #tpu.memory_space<smem>>
    %90 = vector.broadcast %89 : f32 to vector<2x128xf32>
    %91 = arith.mulf %90, %5 : vector<2x128xf32>
    %c2_41 = arith.constant 2 : index
    %92 = memref.load %arg3[%c2_41] : memref<3xf32, #tpu.memory_space<smem>>
    %93 = vector.broadcast %92 : f32 to vector<2x128xf32>
    %94 = arith.addf %91, %93 : vector<2x128xf32>
    %c2_42 = arith.constant 2 : index
    %c0_43 = arith.constant 0 : index
    %95 = memref.load %arg2[%c2_42, %c0_43] : memref<3x4xf32, #tpu.memory_space<smem>>
    %96 = vector.extract_strided_slice %12 {offsets = [0, 0, 0], sizes = [1, 2, 128], strides = [1, 1, 1]} : vector<3x2x128xf32> to vector<1x2x128xf32>
    %97 = vector.shape_cast %96 : vector<1x2x128xf32> to vector<2x128xf32>
    %98 = vector.broadcast %95 : f32 to vector<2x128xf32>
    %99 = arith.mulf %98, %97 : vector<2x128xf32>
    %100 = arith.addf %94, %99 : vector<2x128xf32>
    %c2_44 = arith.constant 2 : index
    %c1_45 = arith.constant 1 : index
    %101 = memref.load %arg2[%c2_44, %c1_45] : memref<3x4xf32, #tpu.memory_space<smem>>
    %102 = vector.extract_strided_slice %12 {offsets = [1, 0, 0], sizes = [1, 2, 128], strides = [1, 1, 1]} : vector<3x2x128xf32> to vector<1x2x128xf32>
    %103 = vector.shape_cast %102 : vector<1x2x128xf32> to vector<2x128xf32>
    %104 = vector.broadcast %101 : f32 to vector<2x128xf32>
    %105 = arith.mulf %104, %103 : vector<2x128xf32>
    %106 = arith.addf %100, %105 : vector<2x128xf32>
    %c2_46 = arith.constant 2 : index
    %c2_47 = arith.constant 2 : index
    %107 = memref.load %arg2[%c2_46, %c2_47] : memref<3x4xf32, #tpu.memory_space<smem>>
    %108 = vector.extract_strided_slice %12 {offsets = [2, 0, 0], sizes = [1, 2, 128], strides = [1, 1, 1]} : vector<3x2x128xf32> to vector<1x2x128xf32>
    %109 = vector.shape_cast %108 : vector<1x2x128xf32> to vector<2x128xf32>
    %110 = vector.broadcast %107 : f32 to vector<2x128xf32>
    %111 = arith.mulf %110, %109 : vector<2x128xf32>
    %112 = arith.addf %106, %111 : vector<2x128xf32>
    %113 = arith.negf %112 : vector<2x128xf32>
    %114 = math.exp %113 : vector<2x128xf32>
    %cst_48 = arith.constant 1.000000e+00 : f32
    %115 = vector.broadcast %cst_48 : f32 to vector<2x128xf32>
    %116 = arith.addf %115, %114 : vector<2x128xf32>
    %117 = arith.divf %115, %116 : vector<2x128xf32>
    %cst_49 = arith.constant 2.550000e+02 : f32
    %118 = vector.broadcast %cst_49 : f32 to vector<2x128xf32>
    %119 = arith.mulf %117, %118 : vector<2x128xf32>
    %cst_50 = arith.constant 0.000000e+00 : f32
    %cst_51 = arith.constant 2.550000e+02 : f32
    %120 = vector.broadcast %cst_50 : f32 to vector<2x128xf32>
    %121 = arith.maximumf %120, %119 : vector<2x128xf32>
    %122 = vector.broadcast %cst_51 : f32 to vector<2x128xf32>
    %123 = arith.minimumf %122, %121 : vector<2x128xf32>
    %c0_52 = arith.constant 0 : index
    %c2_53 = arith.constant 2 : index
    %c0_54 = arith.constant 0 : index
    %c0_55 = arith.constant 0 : index
    %124 = vector.load %arg6[%c0_52, %c2_53, %c0_54, %c0_55] : memref<1x3x2x128xf32, #tpu.memory_space<vmem>>, vector<1x1x2x128xf32>
    %125 = vector.shape_cast %124 : vector<1x1x2x128xf32> to vector<2x128xf32>
    %126 = vector.shape_cast %123 : vector<2x128xf32> to vector<1x1x2x128xf32>
    tpu.vector_store %arg6[%c0_52, %c2_53, %c0_54, %c0_55], %126 {strides = array<i32>} : memref<1x3x2x128xf32, #tpu.memory_space<vmem>>, vector<1x1x2x128xf32>,
    return
  }
  func.func @transform_0(%arg0: i32, %arg1: i32) -> (i32, i32) {
    %c0_i32 = arith.constant 0 : i32
    %c0_i32_0 = arith.constant 0 : i32
    %c0_i32_1 = arith.constant 0 : i32
    return %c0_i32, %c0_i32_0 : i32, i32
  }
  func.func @transform_1(%arg0: i32, %arg1: i32) -> i32 {
    %c0_i32 = arith.constant 0 : i32
    %c0_i32_0 = arith.constant 0 : i32
    return %c0_i32 : i32
  }
  func.func @transform_2(%arg0: i32, %arg1: i32) -> (i32, i32, i32, i32) {
    %c0_i32 = arith.constant 0 : i32
    %c0_i32_0 = arith.constant 0 : i32
    %c0_i32_1 = arith.constant 0 : i32
    return %arg0, %c0_i32, %arg1, %c0_i32_0 : i32, i32, i32, i32
  }
  func.func @transform_3(%arg0: i32, %arg1: i32) -> (i32, i32, i32, i32) {
    %c0_i32 = arith.constant 0 : i32
    %c0_i32_0 = arith.constant 0 : i32
    %c0_i32_1 = arith.constant 0 : i32
    return %arg0, %c0_i32, %arg1, %c0_i32_0 : i32, i32, i32, i32
  }
  func.func @transform_4(%arg0: i32, %arg1: i32) -> (i32, i32, i32, i32) {
    %c0_i32 = arith.constant 0 : i32
    %c0_i32_0 = arith.constant 0 : i32
    %c0_i32_1 = arith.constant 0 : i32
    return %arg0, %c0_i32, %arg1, %c0_i32_0 : i32, i32, i32, i32
  }
}

</mosaic_0001>

<llo_original>
// kernel: tpu_custom_call.1
$region0: #{tpu_custom_call.1}
  #allocation0 [shape = 'u32[]', space=smem, size = 0x4, offset = 0x4, fixed_abs, tag = 'smem constant byte address 0x4 - core index']
  #allocation1 [shape = 'u32[144,128]{1,0:T(1,128)}', space=vmem, size = 0x12000, scoped, tag = 'internal scratch']
  %s0 = inlined_call_operand.hbm [shape: f32[3,4], index: 0, kind: input, shape index: {}]
  %s1 = inlined_call_operand.vmem [shape: f32[3], index: 1, kind: input, shape index: {}]
  %s2 = inlined_call_operand.hbm [shape: f32[2,3,2,128], index: 2, kind: input, shape index: {}]
  %s3 = inlined_call_operand.vmem [shape: f32[2,1,2,128], index: 3, kind: input, shape index: {}]
  %s4 = inlined_call_operand.hbm [shape: f32[2,3,2,128], index: 4, kind: output, shape index: {}]
  %s5 = sld [smem:[#allocation0]]
  $region61: #{tpu_custom_call.1} parent=0
    _
  %s7 = ssub.s32 1, %s5
  %s8 = scalar_select 0, %s7, %s5
  $region1: #{tpu_custom_call.1} parent=0
    #allocation2 [shape = 'u8[2048]{0}', space=smem, size = 0x800, scoped, tag = 'input window, operand 0, single buffered']
    #allocation3 [shape = 's32[2]{0}', space=sflag, size = 0x8, scoped, tag = 'scoped memory for tpu_custom_call.1']
    #allocation4 [shape = 's32[2]{0}', space=sflag, size = 0x8, scoped, tag = 'scoped memory for tpu_custom_call.1']
    #allocation5 [shape = 's32[2]{0}', space=sflag, size = 0x8, scoped, tag = 'scoped memory for tpu_custom_call.1']
    #allocation6 [shape = 's32[2]{0}', space=sflag, size = 0x8, scoped, tag = 'scoped memory for tpu_custom_call.1']
    #allocation7 [shape = 'u8[512]{0}', space=smem, size = 0x200, scoped, tag = 'input window, operand 1, single buffered']
    #allocation8 [shape = 'u8[6144]{0}', space=vmem, size = 0x1800, scoped, tag = 'input window, operand 2']
    #allocation9 [shape = 'u8[6144]{0}', space=vmem, size = 0x1800, scoped, tag = 'output window, operand 0']
    %9 = vsyncpa [#allocation5], 0
    %10 = vsyncpa [#allocation6], 0
    %11 = vsyncpa [#allocation3], 0
    %s12 = scalar_lea.sflag [#allocation3], 1
    %13 = vsyncpa %s12, 0
    %14 = vsyncpa [#allocation4], 0
    %s15 = scalar_lea.sflag [#allocation4], 1
    %16 = vsyncpa %s15, 0
    loop: start=0, step=1, limit=4
    $region2: #{tpu_custom_call.1} parent=1 // loop_pre_header
      _
    $region3: #{tpu_custom_call.1} parent=1 // loop_header
      %s18 = sphi 0, %s22
      %p19 = scmp.ge.s32.totalorder %s18, 4
      %s25 = sphi 0, %s37
      %s26 = sphi 0, %s33
      %s27 = sphi 0, %s25
      %s28 = sphi 0, %s26
      %s29 = sphi 0, %s27
      %s30 = sphi 0, %s28
      %s38 = sphi 0, %s38
      %s40 = sphi 0, %s38
      %s41 = sphi 0, %s40
      %s55 = sphi 0, %s41
      %s59 = sphi 0, %s59
      %s61 = sphi 0, %s59
      %s62 = sphi 0, %s61
      %s76 = sphi 0, %s62
      %s84 = sphi 0, %s86
      %s87 = sphi 0, %s84
      %s88 = sphi 0, %s87
      %s104 = sphi 0, %s88
      %s112 = sphi 0, %s114
      %s115 = sphi 0, %s112
      %s116 = sphi 0, %s115
      %s132 = sphi 0, %s116
      %s140 = sphi 0, %s142
      %s143 = sphi 0, %s140
      %s144 = sphi 0, %s143
      %s160 = sphi 0, %s144
    $region4: #{tpu_custom_call.1} parent=1 // loop_header_branch
      %21 = sbr.rel (%p19) target = $region8
    $region5: #{tpu_custom_call.1} parent=1 // loop_body
      %s23 = ssub.s32 %s18, 1
      %s24 = ssub.s32 %s18, 2
      %s31 = sadd.s32 1, %s26
      %p32 = scmp.ge.s32.totalorder %s31, 1
      %s33 = scalar_select %p32, 0, %s31
      %s34 = sadd.s32 1, %s25
      %s35 = scalar_select %p32, %s34, %s25
      %p36 = scmp.ge.s32.totalorder %s35, 2
      %s37 = scalar_select %p36, 0, %s35
      %s39 = sadd.s32 %s38, 1
      %p42 = scmp.eq.s32.totalorder %s18, 1
      %p43 = scmp.ne.s32.totalorder %s38, %s40
      %p44 = scmp.eq.s32.totalorder %s18, 0
      %p45 = por %p43, %p44
      %p46 = scmp.ne.s32.totalorder %s38, %s40
      %p47 = scmp.eq.s32.totalorder %s23, 1
      %p48 = por %p46, %p47
      %p49 = scmp.ne.s32.totalorder %s40, %s41
      %p50 = scmp.eq.s32.totalorder %s23, 0
      %p51 = por %p49, %p50
      %p52 = scmp.ne.s32.totalorder %s40, %s41
      %p53 = scmp.eq.s32.totalorder %s24, 1
      %p54 = por %p52, %p53
      %p56 = scmp.ne.s32.totalorder %s41, %s55
      %p57 = scmp.eq.s32.totalorder %s24, 0
      %p58 = por %p56, %p57
      %s60 = sadd.s32 %s59, 1
      %p63 = scmp.eq.s32.totalorder %s18, 1
      %p64 = scmp.ne.s32.totalorder %s59, %s61
      %p65 = scmp.eq.s32.totalorder %s18, 0
      %p66 = por %p64, %p65
      %p67 = scmp.ne.s32.totalorder %s59, %s61
      %p68 = scmp.eq.s32.totalorder %s23, 1
      %p69 = por %p67, %p68
      %p70 = scmp.ne.s32.totalorder %s61, %s62
      %p71 = scmp.eq.s32.totalorder %s23, 0
      %p72 = por %p70, %p71
      %p73 = scmp.ne.s32.totalorder %s61, %s62
      %p74 = scmp.eq.s32.totalorder %s24, 1
      %p75 = por %p73, %p74
      %p77 = scmp.ne.s32.totalorder %s62, %s76
      %p78 = scmp.eq.s32.totalorder %s24, 0
      %p79 = por %p77, %p78
      %s80 = ssub.s32 %s25, %s37
      %s81 = ssub.s32 %s26, %s33
      %s82 = sor.u32 %s80, %s81
      %p83 = scmp.eq.s32.totalorder %s82, 0
      %s85 = sadd.s32 %s84, 1
      %s86 = scalar_select %p83, %s84, %s85
      %p89 = pneg %p83
      %p90 = scmp.eq.s32.totalorder %s18, 1
      %p91 = por %p89, %p90
      %p92 = scmp.ne.s32.totalorder %s84, %s87
      %p93 = scmp.eq.s32.totalorder %s18, 0
      %p94 = por %p92, %p93
      %p95 = scmp.ne.s32.totalorder %s84, %s87
      %p96 = scmp.eq.s32.totalorder %s23, 1
      %p97 = por %p95, %p96
      %p98 = scmp.ne.s32.totalorder %s87, %s88
      %p99 = scmp.eq.s32.totalorder %s23, 0
      %p100 = por %p98, %p99
      %p101 = scmp.ne.s32.totalorder %s87, %s88
      %p102 = scmp.eq.s32.totalorder %s24, 1
      %p103 = por %p101, %p102
      %p105 = scmp.ne.s32.totalorder %s88, %s104
      %p106 = scmp.eq.s32.totalorder %s24, 0
      %p107 = por %p105, %p106
      %s108 = ssub.s32 %s25, %s37
      %s109 = ssub.s32 %s26, %s33
      %s110 = sor.u32 %s108, %s109
      %p111 = scmp.eq.s32.totalorder %s110, 0
      %s113 = sadd.s32 %s112, 1
      %s114 = scalar_select %p111, %s112, %s113
      %p117 = pneg %p111
      %p118 = scmp.eq.s32.totalorder %s18, 1
      %p119 = por %p117, %p118
      %p120 = scmp.ne.s32.totalorder %s112, %s115
      %p121 = scmp.eq.s32.totalorder %s18, 0
      %p122 = por %p120, %p121
      %p123 = scmp.ne.s32.totalorder %s112, %s115
      %p124 = scmp.eq.s32.totalorder %s23, 1
      %p125 = por %p123, %p124
      %p126 = scmp.ne.s32.totalorder %s115, %s116
      %p127 = scmp.eq.s32.totalorder %s23, 0
      %p128 = por %p126, %p127
      %p129 = scmp.ne.s32.totalorder %s115, %s116
      %p130 = scmp.eq.s32.totalorder %s24, 1
      %p131 = por %p129, %p130
      %p133 = scmp.ne.s32.totalorder %s116, %s132
      %p134 = scmp.eq.s32.totalorder %s24, 0
      %p135 = por %p133, %p134
      %s136 = ssub.s32 %s25, %s37
      %s137 = ssub.s32 %s26, %s33
      %s138 = sor.u32 %s136, %s137
      %p139 = scmp.eq.s32.totalorder %s138, 0
      %s141 = sadd.s32 %s140, 1
      %s142 = scalar_select %p139, %s140, %s141
      %p145 = pneg %p139
      %p146 = scmp.eq.s32.totalorder %s18, 1
      %p147 = por %p145, %p146
      %p148 = scmp.ne.s32.totalorder %s140, %s143
      %p149 = scmp.eq.s32.totalorder %s18, 0
      %p150 = por %p148, %p149
      %p151 = scmp.ne.s32.totalorder %s140, %s143
      %p152 = scmp.eq.s32.totalorder %s23, 1
      %p153 = por %p151, %p152
      %p154 = scmp.ne.s32.totalorder %s143, %s144
      %p155 = scmp.eq.s32.totalorder %s23, 0
      %p156 = por %p154, %p155
      %p157 = scmp.ne.s32.totalorder %s143, %s144
      %p158 = scmp.eq.s32.totalorder %s24, 1
      %p159 = por %p157, %p158
      %p161 = scmp.ne.s32.totalorder %s144, %s160
      %p162 = scmp.eq.s32.totalorder %s24, 0
      %p163 = por %p161, %p162
      %p164 = scmp.le.s32.totalorder 1, %s18
      %p165 = scmp.lt.s32.totalorder %s18, 3
      %p166 = pnand %p164, %p165
      %p167 = pneg %p166
      // Predicated region
      $region9: #{tpu_custom_call.1} parent=5 // pred_check
        _
      $region10: #{tpu_custom_call.1} parent=5 // pred_check_branch
        %169 = sbr.rel (%p166) target = $region12
      $region11: #{tpu_custom_call.1} parent=5 // pred_region
        %s170 = ssub.s32 %s18, 1
        // Predicated region
        $region13: #{tpu_custom_call.1} parent=11 // pred_check
          %p171 = pneg %p51
        $region14: #{tpu_custom_call.1} parent=11 // pred_check_branch
          %173 = sbr.rel (%p171) target = $region16
        $region15: #{tpu_custom_call.1} parent=11 // pred_region
          %s175 = ssub.s32 64, 64
          %176 = vsyncadd [#allocation5], %s175
          %179 = dma.hbm_to_smem %s0, 64, [#allocation2], [#allocation5]
        $region16: #{tpu_custom_call.1} parent=11 // pred_fallthru
          _
        // Predicated region
        $region17: #{tpu_custom_call.1} parent=11 // pred_check
          %p180 = pneg %p72
        $region18: #{tpu_custom_call.1} parent=11 // pred_check_branch
          %182 = sbr.rel (%p180) target = $region20
        $region19: #{tpu_custom_call.1} parent=11 // pred_region
          %s184 = ssub.s32 16, 16
          %185 = vsyncadd [#allocation6], %s184
          %s187 = sshll.u32 %s1, 4
          %s188 = int_to_ptr.vmem [resolvable:$true] %s187
          %190 = dma.vmem_to_smem %s188, 16, [#allocation7], [#allocation6]
        $region20: #{tpu_custom_call.1} parent=11 // pred_fallthru
          _
      $region12: #{tpu_custom_call.1} parent=5 // pred_fallthru
        _
      %p191 = scmp.lt.s32.totalorder %s18, 2
      // Predicated region
      $region21: #{tpu_custom_call.1} parent=5 // pred_check
        %p192 = pneg %p191
      $region22: #{tpu_custom_call.1} parent=5 // pred_check_branch
        %194 = sbr.rel (%p192) target = $region24
      $region23: #{tpu_custom_call.1} parent=5 // pred_region
        // Predicated region
        $region25: #{tpu_custom_call.1} parent=23 // pred_check
          %p195 = pneg %p94
        $region26: #{tpu_custom_call.1} parent=23 // pred_check_branch
          %197 = sbr.rel (%p195) target = $region28
        $region27: #{tpu_custom_call.1} parent=23 // pred_region
          %s198 = sand.u32 %s84, 1
          %s199 = scalar_lea.sflag [#allocation3], %s198
          %s200 = sand.u32 %s84, 1
          %s201 = smul.addr %s200, 6
          %s202 = scalar_lea.vmem [#allocation8], %s201
          %s204 = ssub.s32 96, 96
          %205 = vsyncadd %s199, %s204
          %s206 = smul.addr %s25, 3
          %s207 = sadd.s32 %s26, %s206
          %s208 = smul.addr %s207, 32
          %s209 = scalar_lea.hbm %s2, %s208
          %s210 = sshll.u32 %s202, 4
          %s211 = int_to_ptr.vmem [resolvable:$true] %s210
          %216 = dma.hbm_to_vmem [thread:$0]  %s209, 96, %s211, %s199, 32, 32, 2
        $region28: #{tpu_custom_call.1} parent=23 // pred_fallthru
          _
        // Predicated region
        $region29: #{tpu_custom_call.1} parent=23 // pred_check
          %p217 = pneg %p122
        $region30: #{tpu_custom_call.1} parent=23 // pred_check_branch
          %219 = sbr.rel (%p217) target = $region32
        $region31: #{tpu_custom_call.1} parent=23 // pred_region
          %p220 = scmp.lt.s32.totalorder %s25, 1
          %s221 = scalar_select %p220, %s25, 1
          %p222 = scmp.lt.s32.totalorder %s26, 0
          %s223 = scalar_select %p222, %s26, 0
          %s224 = sadd.s32 %s223, %s221
          %s225 = smul.addr %s224, 2
          %s226 = scalar_lea.vmem %s3, %s225
        $region32: #{tpu_custom_call.1} parent=23 // pred_fallthru
          _
      $region24: #{tpu_custom_call.1} parent=5 // pred_fallthru
        _
      %p227 = scmp.le.s32.totalorder 1, %s18
      %p228 = scmp.lt.s32.totalorder %s18, 3
      %p229 = pnand %p227, %p228
      %p230 = pneg %p229
      // Predicated region
      $region33: #{tpu_custom_call.1} parent=5 // pred_check
        _
      $region34: #{tpu_custom_call.1} parent=5 // pred_check_branch
        %232 = sbr.rel (%p229) target = $region36
      $region35: #{tpu_custom_call.1} parent=5 // pred_region
        %s233 = ssub.s32 %s18, 1
        // Predicated region
        $region37: #{tpu_custom_call.1} parent=35 // pred_check
          %p234 = pneg %p51
        $region38: #{tpu_custom_call.1} parent=35 // pred_check_branch
          %236 = sbr.rel (%p234) target = $region40
        $region39: #{tpu_custom_call.1} parent=35 // pred_region
          %237 = dma.done [#allocation5], 64
        $region40: #{tpu_custom_call.1} parent=35 // pred_fallthru
          _
        // Predicated region
        $region41: #{tpu_custom_call.1} parent=35 // pred_check
          %p238 = pneg %p72
        $region42: #{tpu_custom_call.1} parent=35 // pred_check_branch
          %240 = sbr.rel (%p238) target = $region44
        $region43: #{tpu_custom_call.1} parent=35 // pred_region
          %241 = dma.done [#allocation6], 16
        $region44: #{tpu_custom_call.1} parent=35 // pred_fallthru
          _
        %s242 = sand.u32 %s87, 1
        %s243 = scalar_lea.sflag [#allocation3], %s242
        %s244 = sand.u32 %s87, 1
        %s245 = smul.addr %s244, 6
        %s246 = scalar_lea.vmem [#allocation8], %s245
        // Predicated region
        $region45: #{tpu_custom_call.1} parent=35 // pred_check
          %p247 = pneg %p100
        $region46: #{tpu_custom_call.1} parent=35 // pred_check_branch
          %249 = sbr.rel (%p247) target = $region48
        $region47: #{tpu_custom_call.1} parent=35 // pred_region
          %250 = dma.done %s243, 96
        $region48: #{tpu_custom_call.1} parent=35 // pred_fallthru
          _
        %251 = sfence
        %p252 = pneg %p51
        %p253 = pneg %p48
        %p254 = pneg %p72
        %p255 = pneg %p69
        %s256 = sand.u32 %s87, 1
        %s257 = scalar_lea.sflag [#allocation3], %s256
        %s258 = sand.u32 %s87, 1
        %s259 = smul.addr %s258, 6
        %s260 = scalar_lea.vmem [#allocation8], %s259
        %p261 = pneg %p100
        %p262 = pneg %p97
        %p263 = scmp.lt.s32.totalorder %s27, 1
        %s264 = scalar_select %p263, %s27, 1
        %p265 = scmp.lt.s32.totalorder %s28, 0
        %s266 = scalar_select %p265, %s28, 0
        %s267 = sadd.s32 %s266, %s264
        %s268 = smul.addr %s267, 2
        %s269 = scalar_lea.vmem %s3, %s268
        %p270 = pneg %p128
        %p271 = pneg %p125
        %p272 = pneg %p156
        %p273 = pneg %p153
        %s274 = sand.u32 %s143, 1
        %s275 = scalar_lea.sflag [#allocation4], %s274
        %s276 = sand.u32 %s143, 1
        %s277 = smul.addr %s276, 6
        %s278 = scalar_lea.vmem [#allocation9], %s277
        %p279 = scmp.lt.s32.totalorder %s27, 1
        %s280 = scalar_select %p279, %s27, 1
        %p281 = scmp.lt.s32.totalorder %s28, 0
        %s282 = scalar_select %p281, %s28, 0
        %s283 = sadd.s32 %s282, %s280
        %s284 = smul.addr %s283, 2
        %s285 = scalar_lea.vmem %s3, %s284
        %v286 = vld [vmem:[%s285] sm:$0x3]
        %vm287 = vcmp.gt.f32.partialorder %v286, 0.0
        %v288 = vsel %vm287, 1, 0
        %v289 = vcvt.s32.f32 %v288
        %v290 = vsub.f32 1.0, %v289
        %v291 = vld [vmem:[%s246] sm:$0x3]
        %v292 = vld [vmem:[%s246 + $0x2] sm:$0x3]
        %v293 = vld [vmem:[%s246 + $0x4] sm:$0x3]
        %v294 = vmul.f32 %v291, %v290
        %v295 = vmul.f32 %v292, %v290
        %v296 = vmul.f32 %v293, %v290
        %s297 = sld [smem:[#allocation2 + $0x3]]
        %v298 = vstv %s297
        %v299 = vmul.f32 %v298, %v289
        %s300 = sld [smem:[#allocation7]]
        %v301 = vstv %s300
        %v302 = vadd.f32 %v299, %v301
        %s303 = sld [smem:[#allocation2]]
        %v304 = vstv %s303
        %v305 = vmul.f32 %v304, %v294
        %v306 = vadd.f32 %v302, %v305
        %s307 = sld [smem:[#allocation2 + $0x1]]
        %v308 = vstv %s307
        %v309 = vmul.f32 %v308, %v295
        %v310 = vadd.f32 %v306, %v309
        %s311 = sld [smem:[#allocation2 + $0x2]]
        %v312 = vstv %s311
        %v313 = vmul.f32 %v312, %v296
        %v314 = vadd.f32 %v310, %v313
        %v315 = vxor.u32 %v314, 2147483648
        %v316 = vmul.f32 %v315, 1.442695
        %v317 = vpow.pop %v316
        %v318 = vadd.f32 %v317, 1.0
        %v319 = vrcp.pop %v318
        %v320 = vmul.f32 1.0, %v319
        %v321 = vmul.f32 %v320, 255.0
        %v322 = vmax.f32 %v321, 0.0
        %v323 = vmin.f32 %v322, 255.0
        %324 = vst [vmem:[%s278] sm:$0x3] %v323
        %s325 = sld [smem:[#allocation2 + $0x83]]
        %v326 = vstv %s325
        %v327 = vmul.f32 %v326, %v289
        %s328 = sld [smem:[#allocation7 + $0x1]]
        %v329 = vstv %s328
        %v330 = vadd.f32 %v327, %v329
        %s331 = sld [smem:[#allocation2 + $0x80]]
        %v332 = vstv %s331
        %v333 = vmul.f32 %v332, %v294
        %v334 = vadd.f32 %v330, %v333
        %s335 = sld [smem:[#allocation2 + $0x81]]
        %v336 = vstv %s335
        %v337 = vmul.f32 %v336, %v295
        %v338 = vadd.f32 %v334, %v337
        %s339 = sld [smem:[#allocation2 + $0x82]]
        %v340 = vstv %s339
        %v341 = vmul.f32 %v340, %v296
        %v342 = vadd.f32 %v338, %v341
        %v343 = vxor.u32 %v342, 2147483648
        %v344 = vmul.f32 %v343, 1.442695
        %v345 = vpow.pop %v344
        %v346 = vadd.f32 %v345, 1.0
        %v347 = vrcp.pop %v346
        %v348 = vmul.f32 1.0, %v347
        %v349 = vmul.f32 %v348, 255.0
        %v350 = vmax.f32 %v349, 0.0
        %v351 = vmin.f32 %v350, 255.0
        %s352 = scalar_lea.vmem %s278, 2 [#allocation9]
        %353 = vst [vmem:[%s352] sm:$0x3] %v351
        %s354 = sld [smem:[#allocation2 + $0x103]]
        %v355 = vstv %s354
        %v356 = vmul.f32 %v355, %v289
        %s357 = sld [smem:[#allocation7 + $0x2]]
        %v358 = vstv %s357
        %v359 = vadd.f32 %v356, %v358
        %s360 = sld [smem:[#allocation2 + $0x100]]
        %v361 = vstv %s360
        %v362 = vmul.f32 %v361, %v294
        %v363 = vadd.f32 %v359, %v362
        %s364 = sld [smem:[#allocation2 + $0x101]]
        %v365 = vstv %s364
        %v366 = vmul.f32 %v365, %v295
        %v367 = vadd.f32 %v363, %v366
        %s368 = sld [smem:[#allocation2 + $0x102]]
        %v369 = vstv %s368
        %v370 = vmul.f32 %v369, %v296
        %v371 = vadd.f32 %v367, %v370
        %v372 = vxor.u32 %v371, 2147483648
        %v373 = vmul.f32 %v372, 1.442695
        %v374 = vpow.pop %v373
        %v375 = vadd.f32 %v374, 1.0
        %v376 = vrcp.pop %v375
        %v377 = vmul.f32 1.0, %v376
        %v378 = vmul.f32 %v377, 255.0
        %v379 = vmax.f32 %v378, 0.0
        %v380 = vmin.f32 %v379, 255.0
        %s381 = scalar_lea.vmem %s278, 4 [#allocation9]
        %382 = vst [vmem:[%s381] sm:$0x3] %v380
        %s383 = sand.u32 %s143, 1
        %s384 = scalar_lea.sflag [#allocation4], %s383
        %s385 = sand.u32 %s143, 1
        %s386 = smul.addr %s385, 6
        %s387 = scalar_lea.vmem [#allocation9], %s386
        // Predicated region
        $region49: #{tpu_custom_call.1} parent=35 // pred_check
          %p388 = pneg %p153
        $region50: #{tpu_custom_call.1} parent=35 // pred_check_branch
          %390 = sbr.rel (%p388) target = $region52
        $region51: #{tpu_custom_call.1} parent=35 // pred_region
          %s392 = ssub.s32 96, 96
          %393 = vsyncadd %s384, %s392
          %s394 = smul.addr %s27, 3
          %s395 = sadd.s32 %s28, %s394
          %s396 = smul.addr %s395, 32
          %s397 = scalar_lea.hbm %s4, %s396
          %s398 = sshll.u32 %s387, 4
          %s399 = int_to_ptr.vmem [resolvable:$true] %s398
          %404 = dma.vmem_to_hbm [thread:$0]  %s399, 96, %s397, %s384, 32, 32, 2
        $region52: #{tpu_custom_call.1} parent=35 // pred_fallthru
          _
      $region36: #{tpu_custom_call.1} parent=5 // pred_fallthru
        _
      %p405 = scmp.le.s32.totalorder 2, %s18
      // Predicated region
      $region53: #{tpu_custom_call.1} parent=5 // pred_check
        %p406 = pneg %p405
      $region54: #{tpu_custom_call.1} parent=5 // pred_check_branch
        %408 = sbr.rel (%p406) target = $region56
      $region55: #{tpu_custom_call.1} parent=5 // pred_region
        %s409 = ssub.s32 %s18, 2
        // Predicated region
        $region57: #{tpu_custom_call.1} parent=55 // pred_check
          %p410 = pneg %p159
        $region58: #{tpu_custom_call.1} parent=55 // pred_check_branch
          %412 = sbr.rel (%p410) target = $region60
        $region59: #{tpu_custom_call.1} parent=55 // pred_region
          %s413 = sand.u32 %s144, 1
          %s414 = scalar_lea.sflag [#allocation4], %s413
          %s415 = sand.u32 %s144, 1
          %s416 = smul.addr %s415, 6
          %s417 = scalar_lea.vmem [#allocation9], %s416
          %418 = dma.done %s414, 96
        $region60: #{tpu_custom_call.1} parent=55 // pred_fallthru
          _
      $region56: #{tpu_custom_call.1} parent=5 // pred_fallthru
        _
    $region6: #{tpu_custom_call.1} parent=1 // loop_footer
      %s22 = sadd.s32 1, %s18
    $region7: #{tpu_custom_call.1} parent=1 // loop_footer_branch
      %17 = sbr.rel target = $region3
    $region8: #{tpu_custom_call.1} parent=1 // loop_exit
      _
    %419 = vsyncpa [#allocation3], 1
    %s420 = scalar_lea.sflag [#allocation3], 1
    %421 = vsyncpa %s420, 1
    %422 = vsyncpa [#allocation4], 1
    %s423 = scalar_lea.sflag [#allocation4], 1
    %424 = vsyncpa %s423, 1
    %425 = vsyncpa [#allocation5], 1
    %s426 = scalar_lea.sflag [#allocation5], 1
    %427 = vsyncpa %s426, 1
    %428 = vsyncpa [#allocation6], 1
    %s429 = scalar_lea.sflag [#allocation6], 1
    %430 = vsyncpa %s429, 1

</llo_original>
